<compile_context>
chip_gen: v5e
topology: v5e:2x2
jax: 0.10.0
libtpu: 0.0.40
codegen_flags: <defaults>
</compile_context>

<pallas_src>
import functools
import math

import jax
import jax.numpy as jnp
from jax.experimental import pallas as pl
from jax.experimental.pallas import tpu as pltpu


def _hswish(v):
    return v * jnp.clip(v + 3.0, 0.0, 6.0) * (1.0 / 6.0)


def _hsigmoid(v):
    return jnp.clip(v + 3.0, 0.0, 6.0) * (1.0 / 6.0)


def mbconv_kernel(x_ref, w1_ref, bce_ref, wpl_ref, sel_ref,
                  wse1t_ref, wse2t_ref, bse_ref, w3_ref, b3_ref,
                  out_ref, *, HW, BB, CR, shifts, apply_shortcut):
    """One grid step = BB images presented as (C, BB*HW), spatial+image on lanes."""
    f32 = jnp.float32
    L = x_ref.shape[-1]              # BB * HW
    CE = w1_ref.shape[0]

    xb = x_ref[...].astype(f32)                                          # (C1, L)

    # 1) expansion 1x1 conv (BN scale pre-folded into w1) + bias + hardswish
    #    -> single batched MXU matmul over all BB*HW lanes
    b1 = bce_ref[:, 0:1].astype(f32)                                     # (CE, 1)
    y = jnp.dot(w1_ref[...].astype(f32), xb, preferred_element_type=f32) + b1
    y = _hswish(y)                                                       # (CE, L)

    # 2) KxK depthwise conv: cyclic lane roll + pre-masked/pre-folded weight plane per
    #    tap (masks tiled per image along the BB*HW lane axis zero cross-image bleed)
    bdw = bce_ref[:, 1:2].astype(f32)                                    # (CE, 1)
    acc = jnp.zeros((CE, L), f32)
    for idx, shift in enumerate(shifts):
        shifted = y if shift == 0 else pltpu.roll(y, shift, axis=1)
        acc = acc + wpl_ref[idx].astype(f32) * shifted
    y = _hswish(acc + bdw)                                               # (CE, L)

    # 3) SE gate, batched over the BB images of the block (row layout, no transposes):
    #    pooled_t[b, c] = mean_p y[c, b*HW + p]   via one selector matmul (1/HW folded)
    pooled = jax.lax.dot_general(sel_ref[...].astype(f32), y,
                                 dimension_numbers=(((1,), (1,)), ((), ())),
                                 preferred_element_type=f32)             # (BB, CE)
    bse = bse_ref[...].astype(f32)                                       # (1, CR+CE)
    hmid = jnp.maximum(
        jnp.dot(pooled, wse1t_ref[...].astype(f32),
                preferred_element_type=f32) + bse[:, :CR], 0.0)          # (BB, CR)
    gate = _hsigmoid(
        jnp.dot(hmid, wse2t_ref[...].astype(f32),
                preferred_element_type=f32) + bse[:, CR:])               # (BB, CE)

    # 4+5) projection 1x1 conv with the SE gate folded into its weights, + bias,
    #      + residual, lane-dense unmasked stores
    w3 = w3_ref[...].astype(f32)                                         # (C2, CE)
    b3 = b3_ref[...].astype(f32)                                         # (C2, 1)
    for b in range(BB):
        lo = b * HW
        yb = y if BB == 1 else y[:, lo:lo + HW]
        ob = jnp.dot(w3 * gate[b:b + 1, :], yb, preferred_element_type=f32) + b3
        if apply_shortcut:
            ob = ob + (xb if BB == 1 else xb[:, lo:lo + HW])
        if BB == 1:
            out_ref[...] = ob.astype(out_ref.dtype)
        else:
            out_ref[:, lo:lo + HW] = ob.astype(out_ref.dtype)


def mbconv_block(x, params, *, k=3, s=1, block_b=1):
    assert s == 1, "stride-2 MBConv path not implemented"
    B, C1, H, W = x.shape
    CE = params["w1"].shape[0]
    C2 = params["w3"].shape[0]
    CR = params["wse1"].shape[0]
    assert B % block_b == 0
    HW = H * W
    L = block_b * HW
    apply_shortcut = (s == 1 and C1 == C2)
    f32 = jnp.float32

    # ---- wrapper-side algebra: fold BN scales into weights, pack small vectors ----
    w1f = (params["s1"] * params["w1"]).astype(f32)                      # (CE, C1)
    wdwf = (params["sdw"] * params["wdw"]).astype(f32)                   # (CE, K*K)
    w3f = (params["s3"] * params["w3"]).astype(f32)                      # (C2, CE)
    bias_ce = jnp.concatenate([params["b1"], params["bdw"]], axis=1).astype(f32)   # (CE, 2)
    wse1_t = params["wse1"].T.astype(f32)                                # (CE, CR)
    wse2_t = params["wse2"].T.astype(f32)                                # (CR, CE)
    bse_row = jnp.concatenate([params["bse1"].reshape(1, CR),
                               params["bse2"].reshape(1, CE)], axis=1).astype(f32)  # (1, CR+CE)
    b3 = params["b3"].astype(f32)                                        # (C2, 1)

    # ---- depthwise: pre-masked, pre-folded weight planes + static roll shifts ----
    pad = k // 2
    pos = jnp.arange(HW)
    hh, ww = pos // W, pos % W
    planes, shifts = [], []
    for dy in range(-pad, pad + 1):
        for dx in range(-pad, pad + 1):
            i = (dy + pad) * k + (dx + pad)
            valid = ((hh + dy >= 0) & (hh + dy < H) &
                     (ww + dx >= 0) & (ww + dx < W)).astype(f32)         # SAME-padding mask
            mask = jnp.tile(valid, (block_b,))                           # tiled per image
            planes.append(wdwf[:, i][:, None] * mask[None, :])           # (CE, L)
            shifts.append((-(dy * W + dx)) % L)
    wplanes = jnp.stack(planes, axis=0)                                  # (K*K, CE, L)

    # ---- SE pooling selector (mean, 1/HW folded in):  pooled = sel @ y^T ----
    sel = (jnp.arange(L)[None, :] // HW ==
           jnp.arange(block_b)[:, None]).astype(f32) / float(HW)         # (BB, L)

    # ---- lane-dense layout: channels on sublanes, (image, spatial) flattened on lanes ----
    xf = x.reshape(B, C1, HW).transpose(1, 0, 2).reshape(C1, B * HW)

    kern = functools.partial(mbconv_kernel, HW=HW, BB=block_b, CR=CR,
                             shifts=tuple(shifts), apply_shortcut=apply_shortcut)

    weights = [w1f, bias_ce, wplanes, sel, wse1_t, wse2_t, bse_row, w3f, b3]

    def cspec(shape):
        n = len(shape)
        return pl.BlockSpec(shape, lambda b, _n=n: (0,) * _n)

    in_specs = ([pl.BlockSpec((C1, L), lambda b: (0, b))]
                + [cspec(w.shape) for w in weights])

    out = pl.pallas_call(
        kern,
        out_shape=jax.ShapeDtypeStruct((C2, B * HW), x.dtype),
        grid_spec=pltpu.PrefetchScalarGridSpec(
            num_scalar_prefetch=0,
            grid=(B // block_b,),
            in_specs=in_specs,
            out_specs=pl.BlockSpec((C2, L), lambda b: (0, b)),
        ),
        compiler_params=pltpu.CompilerParams(
            dimension_semantics=("parallel",),
            vmem_limit_bytes=32 * 1024 * 1024),
    )(xf, *weights)
    return out.reshape(C2, B, HW).transpose(1, 0, 2).reshape(B, C2, H, W)


def init_params(key, c1, c2, *, f=4, k=3, se_r=4):
    """Deterministic synthetic weights. BN folded into (scale, bias) per channel."""
    ce = math.ceil(f * c1)
    cr = max(1, ce // se_r)
    ks = jax.random.split(key, 13)

    def nrm(kk, shape, scale=0.5):
        return (scale * jax.random.normal(kk, shape)).astype(jnp.float32)

    def bn_scale(kk, c):
        return (1.0 + 0.1 * jax.random.normal(kk, (c, 1))).astype(jnp.float32)

    return dict(
        w1=nrm(ks[0], (ce, c1)),                       # expansion 1x1
        s1=bn_scale(ks[1], ce), b1=nrm(ks[2], (ce, 1), 0.1),
        wdw=nrm(ks[3], (ce, k * k)),                   # KxK depthwise
        sdw=bn_scale(ks[4], ce), bdw=nrm(ks[5], (ce, 1), 0.1),
        wse1=nrm(ks[6], (cr, ce)), bse1=nrm(ks[7], (cr, 1), 0.1),   # SE reduce
        wse2=nrm(ks[8], (ce, cr)), bse2=nrm(ks[9], (ce, 1), 0.1),   # SE expand
        w3=nrm(ks[10], (c2, ce)),                      # projection 1x1
        s3=bn_scale(ks[11], c2), b3=nrm(ks[12], (c2, 1), 0.1),
    )


def reference(x, params, *, k=3, s=1):
    """Pure-JAX (XLA conv) reference of the same MBConv block, for validation."""
    B, C1, H, W = x.shape
    CE = params["w1"].shape[0]
    C2 = params["w3"].shape[0]
    dn = ("NCHW", "OIHW", "NCHW")
    hi = jax.lax.Precision.HIGHEST

    def bcast(v):                      # (C,1) -> (1,C,1,1)
        return v.reshape(1, -1, 1, 1)

    w1 = params["w1"].reshape(CE, C1, 1, 1)
    y = jax.lax.conv_general_dilated(x, w1, (1, 1), "SAME",
                                     dimension_numbers=dn, precision=hi)
    y = _hswish(y * bcast(params["s1"]) + bcast(params["b1"]))

    wdw = params["wdw"].reshape(CE, 1, k, k)
    y = jax.lax.conv_general_dilated(y, wdw, (s, s), "SAME",
                                     dimension_numbers=dn,
                                     feature_group_count=CE, precision=hi)
    y = _hswish(y * bcast(params["sdw"]) + bcast(params["bdw"]))

    pooled = y.mean(axis=(2, 3))                                   # (B, CE)
    hmid = jax.nn.relu(pooled @ params["wse1"].T + params["bse1"].reshape(1, -1))
    gate = _hsigmoid(hmid @ params["wse2"].T + params["bse2"].reshape(1, -1))
    y = y * gate[:, :, None, None]

    w3 = params["w3"].reshape(C2, CE, 1, 1)
    y = jax.lax.conv_general_dilated(y, w3, (1, 1), "SAME",
                                     dimension_numbers=dn, precision=hi)
    y = y * bcast(params["s3"]) + bcast(params["b3"])

    if s == 1 and C1 == C2:
        y = y + x
    return y


if __name__ == "__main__":
    key = jax.random.PRNGKey(0)
    k_x, k_p = jax.random.split(key)

    B, C, H, W = 2, 4, 16, 16          # c1 == c2 == 4, s == 1 -> residual active
    f, k = 4, 3                        # expansion -> 16 hidden channels
    x = jax.random.normal(k_x, (B, C, H, W), dtype=jnp.float32)
    params = init_params(k_p, C, C, f=f, k=k)

    ref = jax.block_until_ready(reference(x, params, k=k, s=1))

    # run both the per-image (block_b=1, grid parallel over the batch) and the
    # lane-batched (block_b=2) configurations; the latter exercises the tiled
    # cross-image masks of the rolled depthwise taps.
    for bb in (1, 2):
        out = jax.block_until_ready(mbconv_block(x, params, k=k, s=1, block_b=bb))
        assert out.shape == (B, C, H, W)
        # tolerance covers MXU pass-count rounding differences vs the XLA conv reference
        assert jnp.allclose(out, ref, atol=1e-2, rtol=1e-2), (
            f"block_b={bb}: mismatch vs JAX reference, "
            f"max err {jnp.max(jnp.abs(out - ref))}")

    print("KERNEL_OK")
</pallas_src>

<mosaic_0001>
module attributes {stable_mosaic.version = 11 : i64} {
  func.func @mbconv_kernel(%arg0: i32, %arg1: memref<4x256xf32, #tpu.memory_space<vmem>>, %arg2: memref<16x4xf32, #tpu.memory_space<vmem>>, %arg3: memref<16x2xf32, #tpu.memory_space<vmem>>, %arg4: memref<9x16x256xf32, #tpu.memory_space<vmem>>, %arg5: memref<1x256xf32, #tpu.memory_space<vmem>>, %arg6: memref<16x4xf32, #tpu.memory_space<vmem>>, %arg7: memref<4x16xf32, #tpu.memory_space<vmem>>, %arg8: memref<1x20xf32, #tpu.memory_space<vmem>>, %arg9: memref<4x16xf32, #tpu.memory_space<vmem>>, %arg10: memref<4x1xf32, #tpu.memory_space<vmem>>, %arg11: memref<4x256xf32, #tpu.memory_space<vmem>>) attributes {dimension_semantics = [#tpu.dimension_semantics<parallel>], iteration_bounds = array<i64: 2>, scalar_prefetch = 0 : i64, scratch_operands = 0 : i64, tpu.core_type = #tpu.core_type<tc>, window_params = [{transform_indices = @transform_0, window_bounds = array<i64: 4, 256>}, {pipeline_mode = #tpu.pipeline_mode<synchronous>, transform_indices = @transform_1, window_bounds = array<i64: 16, 4>}, {pipeline_mode = #tpu.pipeline_mode<synchronous>, transform_indices = @transform_2, window_bounds = array<i64: 16, 2>}, {pipeline_mode = #tpu.pipeline_mode<synchronous>, transform_indices = @transform_3, window_bounds = array<i64: 9, 16, 256>}, {pipeline_mode = #tpu.pipeline_mode<synchronous>, transform_indices = @transform_4, window_bounds = array<i64: 1, 256>}, {pipeline_mode = #tpu.pipeline_mode<synchronous>, transform_indices = @transform_5, window_bounds = array<i64: 16, 4>}, {pipeline_mode = #tpu.pipeline_mode<synchronous>, transform_indices = @transform_6, window_bounds = array<i64: 4, 16>}, {pipeline_mode = #tpu.pipeline_mode<synchronous>, transform_indices = @transform_7, window_bounds = array<i64: 1, 20>}, {pipeline_mode = #tpu.pipeline_mode<synchronous>, transform_indices = @transform_8, window_bounds = array<i64: 4, 16>}, {pipeline_mode = #tpu.pipeline_mode<synchronous>, transform_indices = @transform_9, window_bounds = array<i64: 4, 1>}, {transform_indices = @transform_10, window_bounds = array<i64: 4, 256>}]} {
    %c0 = arith.constant 0 : index
    %c0_0 = arith.constant 0 : index
    %0 = vector.load %arg1[%c0, %c0_0] : memref<4x256xf32, #tpu.memory_space<vmem>>, vector<4x256xf32>
    %c0_1 = arith.constant 0 : index
    %c0_2 = arith.constant 0 : index
    %1 = vector.load %arg3[%c0_1, %c0_2] : memref<16x2xf32, #tpu.memory_space<vmem>>, vector<16x1xf32>
    %c0_3 = arith.constant 0 : index
    %c0_4 = arith.constant 0 : index
    %2 = vector.load %arg2[%c0_3, %c0_4] : memref<16x4xf32, #tpu.memory_space<vmem>>, vector<16x4xf32>
    %cst = arith.constant dense<0.000000e+00> : vector<16x256xf32>
    %3 = tpu.matmul %2, %0, %cst {dimension_numbers = #tpu.dot_dimension_numbers<[1], [0], [0], [1], [0, 0, 1, 1], [], []>} : vector<16x4xf32>, vector<4x256xf32>, vector<16x256xf32> -> vector<16x256xf32>
    %4 = vector.broadcast %1 : vector<16x1xf32> to vector<16x256xf32>
    %5 = arith.addf %3, %4 : vector<16x256xf32>
    %cst_5 = arith.constant 3.000000e+00 : f32
    %6 = vector.broadcast %cst_5 : f32 to vector<16x256xf32>
    %7 = arith.addf %5, %6 : vector<16x256xf32>
    %cst_6 = arith.constant 0.000000e+00 : f32
    %cst_7 = arith.constant 6.000000e+00 : f32
    %8 = vector.broadcast %cst_6 : f32 to vector<16x256xf32>
    %9 = arith.maximumf %8, %7 : vector<16x256xf32>
    %10 = vector.broadcast %cst_7 : f32 to vector<16x256xf32>
    %11 = arith.minimumf %10, %9 : vector<16x256xf32>
    %12 = arith.mulf %5, %11 : vector<16x256xf32>
    %cst_8 = arith.constant 0.166666672 : f32
    %13 = vector.broadcast %cst_8 : f32 to vector<16x256xf32>
    %14 = arith.mulf %12, %13 : vector<16x256xf32>
    %c0_9 = arith.constant 0 : index
    %c1 = arith.constant 1 : index
    %15 = vector.load %arg3[%c0_9, %c1] : memref<16x2xf32, #tpu.memory_space<vmem>>, vector<16x1xf32>
    %cst_10 = arith.constant 0.000000e+00 : f32
    %16 = vector.broadcast %cst_10 : f32 to vector<16x256xf32>
    %c17_i32 = arith.constant 17 : i32
    %17 = tpu.dynamic_rotate %14 by %c17_i32 dim 1 : vector<16x256xf32>, i32 -> vector<16x256xf32>
    %c0_11 = arith.constant 0 : index
    %c0_12 = arith.constant 0 : index
    %c0_13 = arith.constant 0 : index
    %18 = vector.load %arg4[%c0_11, %c0_12, %c0_13] : memref<9x16x256xf32, #tpu.memory_space<vmem>>, vector<1x16x256xf32>
    %19 = vector.shape_cast %18 : vector<1x16x256xf32> to vector<16x256xf32>
    %20 = arith.mulf %19, %17 : vector<16x256xf32>
    %21 = arith.addf %16, %20 : vector<16x256xf32>
    %c16_i32 = arith.constant 16 : i32
    %22 = tpu.dynamic_rotate %14 by %c16_i32 dim 1 : vector<16x256xf32>, i32 -> vector<16x256xf32>
    %c1_14 = arith.constant 1 : index
    %c0_15 = arith.constant 0 : index
    %c0_16 = arith.constant 0 : index
    %23 = vector.load %arg4[%c1_14, %c0_15, %c0_16] : memref<9x16x256xf32, #tpu.memory_space<vmem>>, vector<1x16x256xf32>
    %24 = vector.shape_cast %23 : vector<1x16x256xf32> to vector<16x256xf32>
    %25 = arith.mulf %24, %22 : vector<16x256xf32>
    %26 = arith.addf %21, %25 : vector<16x256xf32>
    %c15_i32 = arith.constant 15 : i32
    %27 = tpu.dynamic_rotate %14 by %c15_i32 dim 1 : vector<16x256xf32>, i32 -> vector<16x256xf32>
    %c2 = arith.constant 2 : index
    %c0_17 = arith.constant 0 : index
    %c0_18 = arith.constant 0 : index
    %28 = vector.load %arg4[%c2, %c0_17, %c0_18] : memref<9x16x256xf32, #tpu.memory_space<vmem>>, vector<1x16x256xf32>
    %29 = vector.shape_cast %28 : vector<1x16x256xf32> to vector<16x256xf32>
    %30 = arith.mulf %29, %27 : vector<16x256xf32>
    %31 = arith.addf %26, %30 : vector<16x256xf32>
    %c1_i32 = arith.constant 1 : i32
    %32 = tpu.dynamic_rotate %14 by %c1_i32 dim 1 : vector<16x256xf32>, i32 -> vector<16x256xf32>
    %c3 = arith.constant 3 : index
    %c0_19 = arith.constant 0 : index
    %c0_20 = arith.constant 0 : index
    %33 = vector.load %arg4[%c3, %c0_19, %c0_20] : memref<9x16x256xf32, #tpu.memory_space<vmem>>, vector<1x16x256xf32>
    %34 = vector.shape_cast %33 : vector<1x16x256xf32> to vector<16x256xf32>
    %35 = arith.mulf %34, %32 : vector<16x256xf32>
    %36 = arith.addf %31, %35 : vector<16x256xf32>
    %c4 = arith.constant 4 : index
    %c0_21 = arith.constant 0 : index
    %c0_22 = arith.constant 0 : index
    %37 = vector.load %arg4[%c4, %c0_21, %c0_22] : memref<9x16x256xf32, #tpu.memory_space<vmem>>, vector<1x16x256xf32>
    %38 = vector.shape_cast %37 : vector<1x16x256xf32> to vector<16x256xf32>
    %39 = arith.mulf %38, %14 : vector<16x256xf32>
    %40 = arith.addf %36, %39 : vector<16x256xf32>
    %c255_i32 = arith.constant 255 : i32
    %41 = tpu.dynamic_rotate %14 by %c255_i32 dim 1 : vector<16x256xf32>, i32 -> vector<16x256xf32>
    %c5 = arith.constant 5 : index
    %c0_23 = arith.constant 0 : index
    %c0_24 = arith.constant 0 : index
    %42 = vector.load %arg4[%c5, %c0_23, %c0_24] : memref<9x16x256xf32, #tpu.memory_space<vmem>>, vector<1x16x256xf32>
    %43 = vector.shape_cast %42 : vector<1x16x256xf32> to vector<16x256xf32>
    %44 = arith.mulf %43, %41 : vector<16x256xf32>
    %45 = arith.addf %40, %44 : vector<16x256xf32>
    %c241_i32 = arith.constant 241 : i32
    %46 = tpu.dynamic_rotate %14 by %c241_i32 dim 1 : vector<16x256xf32>, i32 -> vector<16x256xf32>
    %c6 = arith.constant 6 : index
    %c0_25 = arith.constant 0 : index
    %c0_26 = arith.constant 0 : index
    %47 = vector.load %arg4[%c6, %c0_25, %c0_26] : memref<9x16x256xf32, #tpu.memory_space<vmem>>, vector<1x16x256xf32>
    %48 = vector.shape_cast %47 : vector<1x16x256xf32> to vector<16x256xf32>
    %49 = arith.mulf %48, %46 : vector<16x256xf32>
    %50 = arith.addf %45, %49 : vector<16x256xf32>
    %c240_i32 = arith.constant 240 : i32
    %51 = tpu.dynamic_rotate %14 by %c240_i32 dim 1 : vector<16x256xf32>, i32 -> vector<16x256xf32>
    %c7 = arith.constant 7 : index
    %c0_27 = arith.constant 0 : index
    %c0_28 = arith.constant 0 : index
    %52 = vector.load %arg4[%c7, %c0_27, %c0_28] : memref<9x16x256xf32, #tpu.memory_space<vmem>>, vector<1x16x256xf32>
    %53 = vector.shape_cast %52 : vector<1x16x256xf32> to vector<16x256xf32>
    %54 = arith.mulf %53, %51 : vector<16x256xf32>
    %55 = arith.addf %50, %54 : vector<16x256xf32>
    %c239_i32 = arith.constant 239 : i32
    %56 = tpu.dynamic_rotate %14 by %c239_i32 dim 1 : vector<16x256xf32>, i32 -> vector<16x256xf32>
    %c8 = arith.constant 8 : index
    %c0_29 = arith.constant 0 : index
    %c0_30 = arith.constant 0 : index
    %57 = vector.load %arg4[%c8, %c0_29, %c0_30] : memref<9x16x256xf32, #tpu.memory_space<vmem>>, vector<1x16x256xf32>
    %58 = vector.shape_cast %57 : vector<1x16x256xf32> to vector<16x256xf32>
    %59 = arith.mulf %58, %56 : vector<16x256xf32>
    %60 = arith.addf %55, %59 : vector<16x256xf32>
    %61 = vector.broadcast %15 : vector<16x1xf32> to vector<16x256xf32>
    %62 = arith.addf %60, %61 : vector<16x256xf32>
    %cst_31 = arith.constant 3.000000e+00 : f32
    %63 = vector.broadcast %cst_31 : f32 to vector<16x256xf32>
    %64 = arith.addf %62, %63 : vector<16x256xf32>
    %cst_32 = arith.constant 0.000000e+00 : f32
    %cst_33 = arith.constant 6.000000e+00 : f32
    %65 = vector.broadcast %cst_32 : f32 to vector<16x256xf32>
    %66 = arith.maximumf %65, %64 : vector<16x256xf32>
    %67 = vector.broadcast %cst_33 : f32 to vector<16x256xf32>
    %68 = arith.minimumf %67, %66 : vector<16x256xf32>
    %69 = arith.mulf %62, %68 : vector<16x256xf32>
    %cst_34 = arith.constant 0.166666672 : f32
    %70 = vector.broadcast %cst_34 : f32 to vector<16x256xf32>
    %71 = arith.mulf %69, %70 : vector<16x256xf32>
    %c0_35 = arith.constant 0 : index
    %c0_36 = arith.constant 0 : index
    %72 = vector.load %arg5[%c0_35, %c0_36] : memref<1x256xf32, #tpu.memory_space<vmem>>, vector<1x256xf32>
    %cst_37 = arith.constant dense<0.000000e+00> : vector<1x16xf32>
    %73 = tpu.matmul %72, %71, %cst_37 {dimension_numbers = #tpu.dot_dimension_numbers<[1], [1], [0], [0], [0, 0, 1, 0], [], []>} : vector<1x256xf32>, vector<16x256xf32>, vector<1x16xf32> -> vector<1x16xf32>
    %c0_38 = arith.constant 0 : index
    %c0_39 = arith.constant 0 : index
    %74 = vector.load %arg8[%c0_38, %c0_39] : memref<1x20xf32, #tpu.memory_space<vmem>>, vector<1x20xf32>
    %c0_40 = arith.constant 0 : index
    %c0_41 = arith.constant 0 : index
    %75 = vector.load %arg6[%c0_40, %c0_41] : memref<16x4xf32, #tpu.memory_space<vmem>>, vector<16x4xf32>
    %cst_42 = arith.constant dense<0.000000e+00> : vector<1x4xf32>
    %76 = tpu.matmul %73, %75, %cst_42 {dimension_numbers = #tpu.dot_dimension_numbers<[1], [0], [0], [1], [0, 0, 1, 1], [], []>} : vector<1x16xf32>, vector<16x4xf32>, vector<1x4xf32> -> vector<1x4xf32>
    %77 = vector.extract_strided_slice %74 {offsets = [0, 0], sizes = [1, 4], strides = [1, 1]} : vector<1x20xf32> to vector<1x4xf32>
    %78 = arith.addf %76, %77 : vector<1x4xf32>
    %cst_43 = arith.constant 0.000000e+00 : f32
    %79 = vector.broadcast %cst_43 : f32 to vector<1x4xf32>
    %80 = arith.maximumf %78, %79 : vector<1x4xf32>
    %c0_44 = arith.constant 0 : index
    %c0_45 = arith.constant 0 : index
    %81 = vector.load %arg7[%c0_44, %c0_45] : memref<4x16xf32, #tpu.memory_space<vmem>>, vector<4x16xf32>
    %cst_46 = arith.constant dense<0.000000e+00> : vector<1x16xf32>
    %82 = tpu.matmul %80, %81, %cst_46 {dimension_numbers = #tpu.dot_dimension_numbers<[1], [0], [0], [1], [0, 0, 1, 1], [], []>} : vector<1x4xf32>, vector<4x16xf32>, vector<1x16xf32> -> vector<1x16xf32>
    %83 = vector.extract_strided_slice %74 {offsets = [0, 4], sizes = [1, 16], strides = [1, 1]} : vector<1x20xf32> to vector<1x16xf32>
    %84 = arith.addf %82, %83 : vector<1x16xf32>
    %cst_47 = arith.constant 3.000000e+00 : f32
    %85 = vector.broadcast %cst_47 : f32 to vector<1x16xf32>
    %86 = arith.addf %84, %85 : vector<1x16xf32>
    %cst_48 = arith.constant 0.000000e+00 : f32
    %cst_49 = arith.constant 6.000000e+00 : f32
    %87 = vector.broadcast %cst_48 : f32 to vector<1x16xf32>
    %88 = arith.maximumf %87, %86 : vector<1x16xf32>
    %89 = vector.broadcast %cst_49 : f32 to vector<1x16xf32>
    %90 = arith.minimumf %89, %88 : vector<1x16xf32>
    %cst_50 = arith.constant 0.166666672 : f32
    %91 = vector.broadcast %cst_50 : f32 to vector<1x16xf32>
    %92 = arith.mulf %90, %91 : vector<1x16xf32>
    %c0_51 = arith.constant 0 : index
    %c0_52 = arith.constant 0 : index
    %93 = vector.load %arg9[%c0_51, %c0_52] : memref<4x16xf32, #tpu.memory_space<vmem>>, vector<4x16xf32>
    %c0_53 = arith.constant 0 : index
    %c0_54 = arith.constant 0 : index
    %94 = vector.load %arg10[%c0_53, %c0_54] : memref<4x1xf32, #tpu.memory_space<vmem>>, vector<4x1xf32>
    %95 = vector.broadcast %92 : vector<1x16xf32> to vector<4x16xf32>
    %96 = arith.mulf %93, %95 : vector<4x16xf32>
    %cst_55 = arith.constant dense<0.000000e+00> : vector<4x256xf32>
    %97 = tpu.matmul %96, %71, %cst_55 {dimension_numbers = #tpu.dot_dimension_numbers<[1], [0], [0], [1], [0, 0, 1, 1], [], []>} : vector<4x16xf32>, vector<16x256xf32>, vector<4x256xf32> -> vector<4x256xf32>
    %98 = vector.broadcast %94 : vector<4x1xf32> to vector<4x256xf32>
    %99 = arith.addf %97, %98 : vector<4x256xf32>
    %100 = arith.addf %99, %0 : vector<4x256xf32>
    %c0_56 = arith.constant 0 : index
    %c0_57 = arith.constant 0 : index
    %101 = vector.load %arg11[%c0_56, %c0_57] : memref<4x256xf32, #tpu.memory_space<vmem>>, vector<4x256xf32>
    tpu.vector_store %arg11[%c0_56, %c0_57], %100 {strides = array<i32>} : memref<4x256xf32, #tpu.memory_space<vmem>>, vector<4x256xf32>,
    return
  }
  func.func @transform_0(%arg0: i32) -> (i32, i32) {
    %c0_i32 = arith.constant 0 : i32
    %c0_i32_0 = arith.constant 0 : i32
    return %c0_i32, %arg0 : i32, i32
  }
  func.func @transform_1(%arg0: i32) -> (i32, i32) {
    %c0_i32 = arith.constant 0 : i32
    %c0_i32_0 = arith.constant 0 : i32
    %c0_i32_1 = arith.constant 0 : i32
    return %c0_i32, %c0_i32_0 : i32, i32
  }
  func.func @transform_2(%arg0: i32) -> (i32, i32) {
    %c0_i32 = arith.constant 0 : i32
    %c0_i32_0 = arith.constant 0 : i32
    %c0_i32_1 = arith.constant 0 : i32
    return %c0_i32, %c0_i32_0 : i32, i32
  }
  func.func @transform_3(%arg0: i32) -> (i32, i32, i32) {
    %c0_i32 = arith.constant 0 : i32
    %c0_i32_0 = arith.constant 0 : i32
    %c0_i32_1 = arith.constant 0 : i32
    %c0_i32_2 = arith.constant 0 : i32
    return %c0_i32, %c0_i32_0, %c0_i32_1 : i32, i32, i32
  }
  func.func @transform_4(%arg0: i32) -> (i32, i32) {
    %c0_i32 = arith.constant 0 : i32
    %c0_i32_0 = arith.constant 0 : i32
    %c0_i32_1 = arith.constant 0 : i32
    return %c0_i32, %c0_i32_0 : i32, i32
  }
  func.func @transform_5(%arg0: i32) -> (i32, i32) {
    %c0_i32 = arith.constant 0 : i32
    %c0_i32_0 = arith.constant 0 : i32
    %c0_i32_1 = arith.constant 0 : i32
    return %c0_i32, %c0_i32_0 : i32, i32
  }
  func.func @transform_6(%arg0: i32) -> (i32, i32) {
    %c0_i32 = arith.constant 0 : i32
    %c0_i32_0 = arith.constant 0 : i32
    %c0_i32_1 = arith.constant 0 : i32
    return %c0_i32, %c0_i32_0 : i32, i32
  }
  func.func @transform_7(%arg0: i32) -> (i32, i32) {
    %c0_i32 = arith.constant 0 : i32
    %c0_i32_0 = arith.constant 0 : i32
    %c0_i32_1 = arith.constant 0 : i32
    return %c0_i32, %c0_i32_0 : i32, i32
  }
  func.func @transform_8(%arg0: i32) -> (i32, i32) {
    %c0_i32 = arith.constant 0 : i32
    %c0_i32_0 = arith.constant 0 : i32
    %c0_i32_1 = arith.constant 0 : i32
    return %c0_i32, %c0_i32_0 : i32, i32
  }
  func.func @transform_9(%arg0: i32) -> (i32, i32) {
    %c0_i32 = arith.constant 0 : i32
    %c0_i32_0 = arith.constant 0 : i32
    %c0_i32_1 = arith.constant 0 : i32
    return %c0_i32, %c0_i32_0 : i32, i32
  }
  func.func @transform_10(%arg0: i32) -> (i32, i32) {
    %c0_i32 = arith.constant 0 : i32
    %c0_i32_0 = arith.constant 0 : i32
    return %c0_i32, %arg0 : i32, i32
  }
}

</mosaic_0001>

<llo_original>
// kernel: tpu_custom_call.1
$region0: #{tpu_custom_call.1}
  #allocation0 [shape = 'u32[]', space=smem, size = 0x4, offset = 0x4, fixed_abs, tag = 'smem constant byte address 0x4 - core index']
  #allocation1 [shape = 'u32[72,128]{1,0:T(1,128)}', space=vmem, size = 0x9000, scoped, tag = 'internal scratch']
  %s0 = inlined_call_operand.vmem [shape: f32[4,512], index: 0, kind: input, shape index: {}]
  %s1 = inlined_call_operand.vmem [shape: f32[16,4], index: 1, kind: input, shape index: {}]
  %s2 = inlined_call_operand.vmem [shape: f32[16,2], index: 2, kind: input, shape index: {}]
  %s3 = inlined_call_operand.hbm [shape: f32[9,16,256], index: 3, kind: input, shape index: {}]
  %s4 = inlined_call_operand.vmem [shape: f32[1,256], index: 4, kind: input, shape index: {}]
  %s5 = inlined_call_operand.vmem [shape: f32[16,4], index: 5, kind: input, shape index: {}]
  %s6 = inlined_call_operand.vmem [shape: f32[4,16], index: 6, kind: input, shape index: {}]
  %s7 = inlined_call_operand.vmem [shape: f32[1,20], index: 7, kind: input, shape index: {}]
  %s8 = inlined_call_operand.vmem [shape: f32[4,16], index: 8, kind: input, shape index: {}]
  %s9 = inlined_call_operand.vmem [shape: f32[4,1], index: 9, kind: input, shape index: {}]
  %s10 = inlined_call_operand.hbm [shape: f32[4,512], index: 10, kind: output, shape index: {}]
  %s11 = sld [smem:[#allocation0]]
  $region77: #{tpu_custom_call.1} parent=0
    _
  %s13 = ssub.s32 1, %s11
  %s14 = scalar_select 0, %s13, %s11
  $region1: #{tpu_custom_call.1} parent=0
    #allocation2 [shape = 'u8[147456]{0}', space=vmem, size = 0x24000, scoped, tag = 'input window, operand 3, single buffered']
    #allocation3 [shape = 's32[2]{0}', space=sflag, size = 0x8, scoped, tag = 'scoped memory for tpu_custom_call.1']
    #allocation4 [shape = 's32[2]{0}', space=sflag, size = 0x8, scoped, tag = 'scoped memory for tpu_custom_call.1']
    #allocation5 [shape = 'u8[8192]{0}', space=vmem, size = 0x2000, scoped, tag = 'output window, operand 0']
    %15 = vsyncpa [#allocation3], 0
    %16 = vsyncpa [#allocation4], 0
    %s17 = scalar_lea.sflag [#allocation4], 1
    %18 = vsyncpa %s17, 0
    loop: start=0, step=1, limit=4
    $region2: #{tpu_custom_call.1} parent=1 // loop_pre_header
      _
    $region3: #{tpu_custom_call.1} parent=1 // loop_header
      %s20 = sphi 0, %s24
      %p21 = scmp.ge.s32.totalorder %s20, 4
      %s30 = sphi 0, %s32
      %s33 = sphi 0, %s30
      %s34 = sphi 0, %s33
      %s50 = sphi 0, %s34
      %s54 = sphi 0, %s54
      %s56 = sphi 0, %s54
      %s57 = sphi 0, %s56
      %s71 = sphi 0, %s57
      %s75 = sphi 0, %s75
      %s77 = sphi 0, %s75
      %s78 = sphi 0, %s77
      %s92 = sphi 0, %s78
      %s96 = sphi 0, %s96
      %s98 = sphi 0, %s96
      %s99 = sphi 0, %s98
      %s113 = sphi 0, %s99
      %s117 = sphi 0, %s117
      %s119 = sphi 0, %s117
      %s120 = sphi 0, %s119
      %s134 = sphi 0, %s120
      %s138 = sphi 0, %s138
      %s140 = sphi 0, %s138
      %s141 = sphi 0, %s140
      %s155 = sphi 0, %s141
      %s159 = sphi 0, %s159
      %s161 = sphi 0, %s159
      %s162 = sphi 0, %s161
      %s176 = sphi 0, %s162
      %s180 = sphi 0, %s180
      %s182 = sphi 0, %s180
      %s183 = sphi 0, %s182
      %s197 = sphi 0, %s183
      %s201 = sphi 0, %s201
      %s203 = sphi 0, %s201
      %s204 = sphi 0, %s203
      %s218 = sphi 0, %s204
      %s222 = sphi 0, %s222
      %s224 = sphi 0, %s222
      %s225 = sphi 0, %s224
      %s239 = sphi 0, %s225
      %s245 = sphi 0, %s247
      %s248 = sphi 0, %s245
      %s249 = sphi 0, %s248
      %s265 = sphi 0, %s249
    $region4: #{tpu_custom_call.1} parent=1 // loop_header_branch
      %23 = sbr.rel (%p21) target = $region8
    $region5: #{tpu_custom_call.1} parent=1 // loop_body
      %s25 = ssub.s32 %s20, 1
      %s26 = ssub.s32 %s20, 2
      %s27 = sadd.s32 %s20, 1
      %s28 = ssub.s32 %s20, %s27
      %p29 = scmp.eq.s32.totalorder %s28, 0
      %s31 = sadd.s32 %s30, 1
      %s32 = scalar_select %p29, %s30, %s31
      %p35 = pneg %p29
      %p36 = scmp.eq.s32.totalorder %s20, 1
      %p37 = por %p35, %p36
      %p38 = scmp.ne.s32.totalorder %s30, %s33
      %p39 = scmp.eq.s32.totalorder %s20, 0
      %p40 = por %p38, %p39
      %p41 = scmp.ne.s32.totalorder %s30, %s33
      %p42 = scmp.eq.s32.totalorder %s25, 1
      %p43 = por %p41, %p42
      %p44 = scmp.ne.s32.totalorder %s33, %s34
      %p45 = scmp.eq.s32.totalorder %s25, 0
      %p46 = por %p44, %p45
      %p47 = scmp.ne.s32.totalorder %s33, %s34
      %p48 = scmp.eq.s32.totalorder %s26, 1
      %p49 = por %p47, %p48
      %p51 = scmp.ne.s32.totalorder %s34, %s50
      %p52 = scmp.eq.s32.totalorder %s26, 0
      %p53 = por %p51, %p52
      %s55 = sadd.s32 %s54, 1
      %p58 = scmp.eq.s32.totalorder %s20, 1
      %p59 = scmp.ne.s32.totalorder %s54, %s56
      %p60 = scmp.eq.s32.totalorder %s20, 0
      %p61 = por %p59, %p60
      %p62 = scmp.ne.s32.totalorder %s54, %s56
      %p63 = scmp.eq.s32.totalorder %s25, 1
      %p64 = por %p62, %p63
      %p65 = scmp.ne.s32.totalorder %s56, %s57
      %p66 = scmp.eq.s32.totalorder %s25, 0
      %p67 = por %p65, %p66
      %p68 = scmp.ne.s32.totalorder %s56, %s57
      %p69 = scmp.eq.s32.totalorder %s26, 1
      %p70 = por %p68, %p69
      %p72 = scmp.ne.s32.totalorder %s57, %s71
      %p73 = scmp.eq.s32.totalorder %s26, 0
      %p74 = por %p72, %p73
      %s76 = sadd.s32 %s75, 1
      %p79 = scmp.eq.s32.totalorder %s20, 1
      %p80 = scmp.ne.s32.totalorder %s75, %s77
      %p81 = scmp.eq.s32.totalorder %s20, 0
      %p82 = por %p80, %p81
      %p83 = scmp.ne.s32.totalorder %s75, %s77
      %p84 = scmp.eq.s32.totalorder %s25, 1
      %p85 = por %p83, %p84
      %p86 = scmp.ne.s32.totalorder %s77, %s78
      %p87 = scmp.eq.s32.totalorder %s25, 0
      %p88 = por %p86, %p87
      %p89 = scmp.ne.s32.totalorder %s77, %s78
      %p90 = scmp.eq.s32.totalorder %s26, 1
      %p91 = por %p89, %p90
      %p93 = scmp.ne.s32.totalorder %s78, %s92
      %p94 = scmp.eq.s32.totalorder %s26, 0
      %p95 = por %p93, %p94
      %s97 = sadd.s32 %s96, 1
      %p100 = scmp.eq.s32.totalorder %s20, 1
      %p101 = scmp.ne.s32.totalorder %s96, %s98
      %p102 = scmp.eq.s32.totalorder %s20, 0
      %p103 = por %p101, %p102
      %p104 = scmp.ne.s32.totalorder %s96, %s98
      %p105 = scmp.eq.s32.totalorder %s25, 1
      %p106 = por %p104, %p105
      %p107 = scmp.ne.s32.totalorder %s98, %s99
      %p108 = scmp.eq.s32.totalorder %s25, 0
      %p109 = por %p107, %p108
      %p110 = scmp.ne.s32.totalorder %s98, %s99
      %p111 = scmp.eq.s32.totalorder %s26, 1
      %p112 = por %p110, %p111
      %p114 = scmp.ne.s32.totalorder %s99, %s113
      %p115 = scmp.eq.s32.totalorder %s26, 0
      %p116 = por %p114, %p115
      %s118 = sadd.s32 %s117, 1
      %p121 = scmp.eq.s32.totalorder %s20, 1
      %p122 = scmp.ne.s32.totalorder %s117, %s119
      %p123 = scmp.eq.s32.totalorder %s20, 0
      %p124 = por %p122, %p123
      %p125 = scmp.ne.s32.totalorder %s117, %s119
      %p126 = scmp.eq.s32.totalorder %s25, 1
      %p127 = por %p125, %p126
      %p128 = scmp.ne.s32.totalorder %s119, %s120
      %p129 = scmp.eq.s32.totalorder %s25, 0
      %p130 = por %p128, %p129
      %p131 = scmp.ne.s32.totalorder %s119, %s120
      %p132 = scmp.eq.s32.totalorder %s26, 1
      %p133 = por %p131, %p132
      %p135 = scmp.ne.s32.totalorder %s120, %s134
      %p136 = scmp.eq.s32.totalorder %s26, 0
      %p137 = por %p135, %p136
      %s139 = sadd.s32 %s138, 1
      %p142 = scmp.eq.s32.totalorder %s20, 1
      %p143 = scmp.ne.s32.totalorder %s138, %s140
      %p144 = scmp.eq.s32.totalorder %s20, 0
      %p145 = por %p143, %p144
      %p146 = scmp.ne.s32.totalorder %s138, %s140
      %p147 = scmp.eq.s32.totalorder %s25, 1
      %p148 = por %p146, %p147
      %p149 = scmp.ne.s32.totalorder %s140, %s141
      %p150 = scmp.eq.s32.totalorder %s25, 0
      %p151 = por %p149, %p150
      %p152 = scmp.ne.s32.totalorder %s140, %s141
      %p153 = scmp.eq.s32.totalorder %s26, 1
      %p154 = por %p152, %p153
      %p156 = scmp.ne.s32.totalorder %s141, %s155
      %p157 = scmp.eq.s32.totalorder %s26, 0
      %p158 = por %p156, %p157
      %s160 = sadd.s32 %s159, 1
      %p163 = scmp.eq.s32.totalorder %s20, 1
      %p164 = scmp.ne.s32.totalorder %s159, %s161
      %p165 = scmp.eq.s32.totalorder %s20, 0
      %p166 = por %p164, %p165
      %p167 = scmp.ne.s32.totalorder %s159, %s161
      %p168 = scmp.eq.s32.totalorder %s25, 1
      %p169 = por %p167, %p168
      %p170 = scmp.ne.s32.totalorder %s161, %s162
      %p171 = scmp.eq.s32.totalorder %s25, 0
      %p172 = por %p170, %p171
      %p173 = scmp.ne.s32.totalorder %s161, %s162
      %p174 = scmp.eq.s32.totalorder %s26, 1
      %p175 = por %p173, %p174
      %p177 = scmp.ne.s32.totalorder %s162, %s176
      %p178 = scmp.eq.s32.totalorder %s26, 0
      %p179 = por %p177, %p178
      %s181 = sadd.s32 %s180, 1
      %p184 = scmp.eq.s32.totalorder %s20, 1
      %p185 = scmp.ne.s32.totalorder %s180, %s182
      %p186 = scmp.eq.s32.totalorder %s20, 0
      %p187 = por %p185, %p186
      %p188 = scmp.ne.s32.totalorder %s180, %s182
      %p189 = scmp.eq.s32.totalorder %s25, 1
      %p190 = por %p188, %p189
      %p191 = scmp.ne.s32.totalorder %s182, %s183
      %p192 = scmp.eq.s32.totalorder %s25, 0
      %p193 = por %p191, %p192
      %p194 = scmp.ne.s32.totalorder %s182, %s183
      %p195 = scmp.eq.s32.totalorder %s26, 1
      %p196 = por %p194, %p195
      %p198 = scmp.ne.s32.totalorder %s183, %s197
      %p199 = scmp.eq.s32.totalorder %s26, 0
      %p200 = por %p198, %p199
      %s202 = sadd.s32 %s201, 1
      %p205 = scmp.eq.s32.totalorder %s20, 1
      %p206 = scmp.ne.s32.totalorder %s201, %s203
      %p207 = scmp.eq.s32.totalorder %s20, 0
      %p208 = por %p206, %p207
      %p209 = scmp.ne.s32.totalorder %s201, %s203
      %p210 = scmp.eq.s32.totalorder %s25, 1
      %p211 = por %p209, %p210
      %p212 = scmp.ne.s32.totalorder %s203, %s204
      %p213 = scmp.eq.s32.totalorder %s25, 0
      %p214 = por %p212, %p213
      %p215 = scmp.ne.s32.totalorder %s203, %s204
      %p216 = scmp.eq.s32.totalorder %s26, 1
      %p217 = por %p215, %p216
      %p219 = scmp.ne.s32.totalorder %s204, %s218
      %p220 = scmp.eq.s32.totalorder %s26, 0
      %p221 = por %p219, %p220
      %s223 = sadd.s32 %s222, 1
      %p226 = scmp.eq.s32.totalorder %s20, 1
      %p227 = scmp.ne.s32.totalorder %s222, %s224
      %p228 = scmp.eq.s32.totalorder %s20, 0
      %p229 = por %p227, %p228
      %p230 = scmp.ne.s32.totalorder %s222, %s224
      %p231 = scmp.eq.s32.totalorder %s25, 1
      %p232 = por %p230, %p231
      %p233 = scmp.ne.s32.totalorder %s224, %s225
      %p234 = scmp.eq.s32.totalorder %s25, 0
      %p235 = por %p233, %p234
      %p236 = scmp.ne.s32.totalorder %s224, %s225
      %p237 = scmp.eq.s32.totalorder %s26, 1
      %p238 = por %p236, %p237
      %p240 = scmp.ne.s32.totalorder %s225, %s239
      %p241 = scmp.eq.s32.totalorder %s26, 0
      %p242 = por %p240, %p241
      %s243 = ssub.s32 %s20, %s27
      %p244 = scmp.eq.s32.totalorder %s243, 0
      %s246 = sadd.s32 %s245, 1
      %s247 = scalar_select %p244, %s245, %s246
      %p250 = pneg %p244
      %p251 = scmp.eq.s32.totalorder %s20, 1
      %p252 = por %p250, %p251
      %p253 = scmp.ne.s32.totalorder %s245, %s248
      %p254 = scmp.eq.s32.totalorder %s20, 0
      %p255 = por %p253, %p254
      %p256 = scmp.ne.s32.totalorder %s245, %s248
      %p257 = scmp.eq.s32.totalorder %s25, 1
      %p258 = por %p256, %p257
      %p259 = scmp.ne.s32.totalorder %s248, %s249
      %p260 = scmp.eq.s32.totalorder %s25, 0
      %p261 = por %p259, %p260
      %p262 = scmp.ne.s32.totalorder %s248, %s249
      %p263 = scmp.eq.s32.totalorder %s26, 1
      %p264 = por %p262, %p263
      %p266 = scmp.ne.s32.totalorder %s249, %s265
      %p267 = scmp.eq.s32.totalorder %s26, 0
      %p268 = por %p266, %p267
      %p269 = scmp.le.s32.totalorder 1, %s20
      %p270 = scmp.lt.s32.totalorder %s20, 3
      %p271 = pnand %p269, %p270
      %p272 = pneg %p271
      // Predicated region
      $region9: #{tpu_custom_call.1} parent=5 // pred_check
        _
      $region10: #{tpu_custom_call.1} parent=5 // pred_check_branch
        %274 = sbr.rel (%p271) target = $region12
      $region11: #{tpu_custom_call.1} parent=5 // pred_region
        %s275 = ssub.s32 %s20, 1
        // Predicated region
        $region13: #{tpu_custom_call.1} parent=11 // pred_check
          %p276 = pneg %p67
        $region14: #{tpu_custom_call.1} parent=11 // pred_check_branch
          %278 = sbr.rel (%p276) target = $region16
        $region15: #{tpu_custom_call.1} parent=11 // pred_region
          _
        $region16: #{tpu_custom_call.1} parent=11 // pred_fallthru
          _
        // Predicated region
        $region17: #{tpu_custom_call.1} parent=11 // pred_check
          %p279 = pneg %p88
        $region18: #{tpu_custom_call.1} parent=11 // pred_check_branch
          %281 = sbr.rel (%p279) target = $region20
        $region19: #{tpu_custom_call.1} parent=11 // pred_region
          _
        $region20: #{tpu_custom_call.1} parent=11 // pred_fallthru
          _
        // Predicated region
        $region21: #{tpu_custom_call.1} parent=11 // pred_check
          %p282 = pneg %p109
        $region22: #{tpu_custom_call.1} parent=11 // pred_check_branch
          %284 = sbr.rel (%p282) target = $region24
        $region23: #{tpu_custom_call.1} parent=11 // pred_region
          %286 = vsyncadd [#allocation3], 0
          %s287 = sshll.u32 %s3, 4
          %s288 = int_to_ptr.hbm [resolvable:$true] %s287
          %s289 = sshll.u32 [#allocation2], 4
          %s290 = int_to_ptr.vmem [resolvable:$true] %s289
          %295 = dma.hbm_to_vmem [thread:$0]  %s288, 4608, %s290, [#allocation3], 256, 256, 16
        $region24: #{tpu_custom_call.1} parent=11 // pred_fallthru
          _
        // Predicated region
        $region25: #{tpu_custom_call.1} parent=11 // pred_check
          %p296 = pneg %p130
        $region26: #{tpu_custom_call.1} parent=11 // pred_check_branch
          %298 = sbr.rel (%p296) target = $region28
        $region27: #{tpu_custom_call.1} parent=11 // pred_region
          _
        $region28: #{tpu_custom_call.1} parent=11 // pred_fallthru
          _
        // Predicated region
        $region29: #{tpu_custom_call.1} parent=11 // pred_check
          %p299 = pneg %p151
        $region30: #{tpu_custom_call.1} parent=11 // pred_check_branch
          %301 = sbr.rel (%p299) target = $region32
        $region31: #{tpu_custom_call.1} parent=11 // pred_region
          _
        $region32: #{tpu_custom_call.1} parent=11 // pred_fallthru
          _
        // Predicated region
        $region33: #{tpu_custom_call.1} parent=11 // pred_check
          %p302 = pneg %p172
        $region34: #{tpu_custom_call.1} parent=11 // pred_check_branch
          %304 = sbr.rel (%p302) target = $region36
        $region35: #{tpu_custom_call.1} parent=11 // pred_region
          _
        $region36: #{tpu_custom_call.1} parent=11 // pred_fallthru
          _
        // Predicated region
        $region37: #{tpu_custom_call.1} parent=11 // pred_check
          %p305 = pneg %p193
        $region38: #{tpu_custom_call.1} parent=11 // pred_check_branch
          %307 = sbr.rel (%p305) target = $region40
        $region39: #{tpu_custom_call.1} parent=11 // pred_region
          _
        $region40: #{tpu_custom_call.1} parent=11 // pred_fallthru
          _
        // Predicated region
        $region41: #{tpu_custom_call.1} parent=11 // pred_check
          %p308 = pneg %p214
        $region42: #{tpu_custom_call.1} parent=11 // pred_check_branch
          %310 = sbr.rel (%p308) target = $region44
        $region43: #{tpu_custom_call.1} parent=11 // pred_region
          _
        $region44: #{tpu_custom_call.1} parent=11 // pred_fallthru
          _
        // Predicated region
        $region45: #{tpu_custom_call.1} parent=11 // pred_check
          %p311 = pneg %p235
        $region46: #{tpu_custom_call.1} parent=11 // pred_check_branch
          %313 = sbr.rel (%p311) target = $region48
        $region47: #{tpu_custom_call.1} parent=11 // pred_region
          _
        $region48: #{tpu_custom_call.1} parent=11 // pred_fallthru
          _
      $region12: #{tpu_custom_call.1} parent=5 // pred_fallthru
        _
      %p314 = scmp.lt.s32.totalorder %s20, 2
      // Predicated region
      $region49: #{tpu_custom_call.1} parent=5 // pred_check
        %p315 = pneg %p314
      $region50: #{tpu_custom_call.1} parent=5 // pred_check_branch
        %317 = sbr.rel (%p315) target = $region52
      $region51: #{tpu_custom_call.1} parent=5 // pred_region
        // Predicated region
        $region53: #{tpu_custom_call.1} parent=51 // pred_check
          %p318 = pneg %p40
        $region54: #{tpu_custom_call.1} parent=51 // pred_check_branch
          %320 = sbr.rel (%p318) target = $region56
        $region55: #{tpu_custom_call.1} parent=51 // pred_region
          %s321 = smul.u32 2, %s20
          %p322 = scmp.lt.s32.totalorder %s321, 3
          %s323 = scalar_select %p322, %s321, 3
          %s324 = smul.addr %s323, 4
          %s325 = scalar_lea.vmem %s0, %s324
          %s326 = smul.u32 2, %s20
        $region56: #{tpu_custom_call.1} parent=51 // pred_fallthru
          _
      $region52: #{tpu_custom_call.1} parent=5 // pred_fallthru
        _
      %p327 = scmp.le.s32.totalorder 1, %s20
      %p328 = scmp.lt.s32.totalorder %s20, 3
      %p329 = pnand %p327, %p328
      %p330 = pneg %p329
      // Predicated region
      $region57: #{tpu_custom_call.1} parent=5 // pred_check
        _
      $region58: #{tpu_custom_call.1} parent=5 // pred_check_branch
        %332 = sbr.rel (%p329) target = $region60
      $region59: #{tpu_custom_call.1} parent=5 // pred_region
        %s333 = ssub.s32 %s20, 1
        // Predicated region
        $region61: #{tpu_custom_call.1} parent=59 // pred_check
          %p334 = pneg %p109
        $region62: #{tpu_custom_call.1} parent=59 // pred_check_branch
          %336 = sbr.rel (%p334) target = $region64
        $region63: #{tpu_custom_call.1} parent=59 // pred_region
          %338 = dma.done [#allocation3], 4608
        $region64: #{tpu_custom_call.1} parent=59 // pred_fallthru
          _
        %s339 = smul.u32 2, %s25
        %p340 = scmp.lt.s32.totalorder %s339, 3
        %s341 = scalar_select %p340, %s339, 3
        %s342 = smul.addr %s341, 4
        %s343 = scalar_lea.vmem %s0, %s342
        %p344 = pneg %p46
        %p345 = pneg %p43
        %p346 = pneg %p67
        %p347 = pneg %p64
        %p348 = pneg %p88
        %p349 = pneg %p85
        %p350 = pneg %p109
        %p351 = pneg %p106
        %p352 = pneg %p130
        %p353 = pneg %p127
        %p354 = pneg %p151
        %p355 = pneg %p148
        %p356 = pneg %p172
        %p357 = pneg %p169
        %p358 = pneg %p193
        %p359 = pneg %p190
        %p360 = pneg %p214
        %p361 = pneg %p211
        %p362 = pneg %p235
        %p363 = pneg %p232
        %p364 = pneg %p261
        %p365 = pneg %p258
        %s366 = sand.u32 %s248, 1
        %s367 = scalar_lea.sflag [#allocation4], %s366
        %s368 = sand.u32 %s248, 1
        %s369 = smul.addr %s368, 8
        %s370 = scalar_lea.vmem [#allocation5], %s369
        %s371 = smul.u32 2, %s25
        %p372 = scmp.lt.s32.totalorder %s371, 3
        %s373 = scalar_select %p372, %s371, 3
        %s374 = smul.addr %s373, 4
        %s375 = scalar_lea.vmem %s0, %s374
        %s376 = smul.u32 2, %s25
        %s377 = smul.u32 2, %s25
        %v378 = vld [vmem:[%s375] sm:$0xff]
        %v379 = vld [vmem:[%s2] sm:$0xff]
        %v380 = vld [vmem:[%s2 + $0x8] sm:$0xff]
        %v381 = vld [vmem:[%s1] sm:$0xff]
        %v382 = vld [vmem:[%s1 + $0x8] sm:$0xff]
        %384 = vset.pattern.permute.xlu0 0
        %385 = vperm.xlu0 %384, %v379
        %v386 = vpop.permute.xlu0 %385
        %389 = vset.pattern.permute.xlu0 0
        %390 = vperm.xlu0 %389, %v380
        %v391 = vpop.permute.xlu0 %390
        %394 = vst [vmem:[#allocation1] ss:$2 sm:$0xff] %v378
        %v395 = vld.sshfl [vmem:[#allocation1] sm:$0xff pattern:$0x75316420]
        %v396 = vld.sshfl [vmem:[#allocation1 + $0x8] sm:$0xff pattern:$0x75316420]
        %vm397 = vcmask 31744
        %v399 = vsel %vm397, %v381, 0
        %v402 = vsel %vm397, %v382, 0
        %vm404 = vcmask 1043456
        %v405 = vsel %vm404, %v395, 0
        %v407 = vsel %vm404, %v396, 0
        %409 = vmatpush.msra.mxu0 0.0
        %410 = vmatpush.msra.mxu0 0.0
        %411 = vmatpush.msra.mxu0 0.0
        %412 = vmatpush.msra.mxu0 0.0
        %413 = vmatpush.msra.mxu0 0.0
        %414 = vmatpush.msra.mxu0 0.0
        %415 = vmatpush.msra.mxu0 0.0
        %416 = vmatpush.msra.mxu0 0.0
        %417 = vmatpush.msra.mxu0 0.0
        %418 = vmatpush.msra.mxu0 0.0
        %419 = vmatpush.msra.mxu0 0.0
        %420 = vmatpush.msra.mxu0 0.0
        %421 = vmatpush.msra.mxu0 0.0
        %422 = vmatpush.msra.mxu0 0.0
        %423 = vmatpush.msra.mxu0 0.0
        %424 = vmatpush.msra.mxu0 %v405
        %425 = vmatmul.f32.gmra.mxu0 %v399
        %v426 = vpop.f32.mrf.mxu0
        %v427 = vadd.f32 %v386, %v426
        %428 = vmatmul.f32.gmra.mxu0 %v402
        %v429 = vpop.f32.mrf.mxu0
        %v430 = vadd.f32 %v391, %v429
        %431 = vdwg.mxu0
        %432 = vmatpush.msra.mxu0 0.0
        %433 = vmatpush.msra.mxu0 0.0
        %434 = vmatpush.msra.mxu0 0.0
        %435 = vmatpush.msra.mxu0 0.0
        %436 = vmatpush.msra.mxu0 0.0
        %437 = vmatpush.msra.mxu0 0.0
        %438 = vmatpush.msra.mxu0 0.0
        %439 = vmatpush.msra.mxu0 0.0
        %440 = vmatpush.msra.mxu0 0.0
        %441 = vmatpush.msra.mxu0 0.0
        %442 = vmatpush.msra.mxu0 0.0
        %443 = vmatpush.msra.mxu0 0.0
        %444 = vmatpush.msra.mxu0 0.0
        %445 = vmatpush.msra.mxu0 0.0
        %446 = vmatpush.msra.mxu0 0.0
        %447 = vmatpush.msra.mxu0 %v407
        %448 = vmatmul.f32.gmra.mxu0 %v399
        %v449 = vpop.f32.mrf.mxu0
        %v450 = vadd.f32 %v386, %v449
        %451 = vmatmul.f32.gmra.mxu0 %v402
        %v452 = vpop.f32.mrf.mxu0
        %v453 = vadd.f32 %v391, %v452
        %454 = vdwg.mxu0
        %v455 = vadd.f32 %v427, 3.0
        %v456 = vadd.f32 %v450, 3.0
        %v457 = vadd.f32 %v430, 3.0
        %v458 = vadd.f32 %v453, 3.0
        %v459 = vmax.f32 %v455, 0.0
        %v460 = vmax.f32 %v456, 0.0
        %v461 = vmax.f32 %v457, 0.0
        %v462 = vmax.f32 %v458, 0.0
        %v463 = vmin.f32 %v459, 6.0
        %v464 = vmin.f32 %v460, 6.0
        %v465 = vmin.f32 %v461, 6.0
        %v466 = vmin.f32 %v462, 6.0
        %v467 = vmul.f32 %v427, %v463
        %v468 = vmul.f32 %v450, %v464
        %v469 = vmul.f32 %v430, %v465
        %v470 = vmul.f32 %v453, %v466
        %v471 = vmul.f32 %v467, 0.16666667
        %v472 = vmul.f32 %v468, 0.16666667
        %v473 = vmul.f32 %v469, 0.16666667
        %v474 = vmul.f32 %v470, 0.16666667
        %v475 = vld [vmem:[%s2] sm:$0xff]
        %v476 = vld [vmem:[%s2 + $0x8] sm:$0xff]
        %477 = vrot.lane.b32.xlu0 %v471, 17
        %v478 = vpop.permute.xlu0 %477
        %479 = vrot.lane.b32.xlu0 %v473, 17
        %v480 = vpop.permute.xlu0 %479
        %481 = vrot.lane.b32.xlu0 %v472, 17
        %v482 = vpop.permute.xlu0 %481
        %483 = vrot.lane.b32.xlu0 %v474, 17
        %v484 = vpop.permute.xlu0 %483
        %v485 = vlaneseq
        %v486 = vand.u32 %v485, 127
        %vm487 = vcmp.lt.s32.totalorder %v486, 17
        %v488 = vsel %vm487, %v478, %v482
        %v489 = vsel %vm487, %v480, %v484
        %v490 = vsel %vm487, %v482, %v478
        %v491 = vsel %vm487, %v484, %v480
        %v492 = vld [vmem:[#allocation2] sm:$0xff]
        %v493 = vld [vmem:[#allocation2 + $0x8] sm:$0xff]
        %v494 = vld [vmem:[#allocation2 + $0x10] sm:$0xff]
        %v495 = vld [vmem:[#allocation2 + $0x18] sm:$0xff]
        %v496 = vmul.f32 %v492, %v490
        %v497 = vmul.f32 %v493, %v488
        %v498 = vmul.f32 %v494, %v491
        %v499 = vmul.f32 %v495, %v489
        %v500 = vadd.f32 %v496, 0.0
        %v501 = vadd.f32 %v497, 0.0
        %v502 = vadd.f32 %v498, 0.0
        %v503 = vadd.f32 %v499, 0.0
        %504 = vrot.lane.b32.xlu0 %v471, 16
        %v505 = vpop.permute.xlu0 %504
        %506 = vrot.lane.b32.xlu0 %v473, 16
        %v507 = vpop.permute.xlu0 %506
        %508 = vrot.lane.b32.xlu0 %v472, 16
        %v509 = vpop.permute.xlu0 %508
        %510 = vrot.lane.b32.xlu0 %v474, 16
        %v511 = vpop.permute.xlu0 %510
        %vm512 = vcmp.lt.s32.totalorder %v486, 16
        %v513 = vsel %vm512, %v505, %v509
        %v514 = vsel %vm512, %v507, %v511
        %v515 = vsel %vm512, %v509, %v505
        %v516 = vsel %vm512, %v511, %v507
        %s517 = scalar_lea.vmem [#allocation2], 32
        %v518 = vld [vmem:[%s517] sm:$0xff]
        %v519 = vld [vmem:[%s517 + $0x8] sm:$0xff]
        %v520 = vld [vmem:[%s517 + $0x10] sm:$0xff]
        %v521 = vld [vmem:[%s517 + $0x18] sm:$0xff]
        %v522 = vmul.f32 %v518, %v515
        %v523 = vmul.f32 %v519, %v513
        %v524 = vmul.f32 %v520, %v516
        %v525 = vmul.f32 %v521, %v514
        %v526 = vadd.f32 %v500, %v522
        %v527 = vadd.f32 %v501, %v523
        %v528 = vadd.f32 %v502, %v524
        %v529 = vadd.f32 %v503, %v525
        %530 = vrot.lane.b32.xlu0 %v471, 15
        %v531 = vpop.permute.xlu0 %530
        %532 = vrot.lane.b32.xlu0 %v473, 15
        %v533 = vpop.permute.xlu0 %532
        %534 = vrot.lane.b32.xlu0 %v472, 15
        %v535 = vpop.permute.xlu0 %534
        %536 = vrot.lane.b32.xlu0 %v474, 15
        %v537 = vpop.permute.xlu0 %536
        %vm538 = vcmp.lt.s32.totalorder %v486, 15
        %v539 = vsel %vm538, %v531, %v535
        %v540 = vsel %vm538, %v533, %v537
        %v541 = vsel %vm538, %v535, %v531
        %v542 = vsel %vm538, %v537, %v533
        %s543 = scalar_lea.vmem [#allocation2], 64
        %v544 = vld [vmem:[%s543] sm:$0xff]
        %v545 = vld [vmem:[%s543 + $0x8] sm:$0xff]
        %v546 = vld [vmem:[%s543 + $0x10] sm:$0xff]
        %v547 = vld [vmem:[%s543 + $0x18] sm:$0xff]
        %v548 = vmul.f32 %v544, %v541
        %v549 = vmul.f32 %v545, %v539
        %v550 = vmul.f32 %v546, %v542
        %v551 = vmul.f32 %v547, %v540
        %v552 = vadd.f32 %v526, %v548
        %v553 = vadd.f32 %v527, %v549
        %v554 = vadd.f32 %v528, %v550
        %v555 = vadd.f32 %v529, %v551
        %556 = vrot.lane.b32.xlu0 %v471, 1
        %v557 = vpop.permute.xlu0 %556
        %558 = vrot.lane.b32.xlu0 %v473, 1
        %v559 = vpop.permute.xlu0 %558
        %560 = vrot.lane.b32.xlu0 %v472, 1
        %v561 = vpop.permute.xlu0 %560
        %562 = vrot.lane.b32.xlu0 %v474, 1
        %v563 = vpop.permute.xlu0 %562
        %vm564 = vcmp.lt.s32.totalorder %v486, 1
        %v565 = vsel %vm564, %v557, %v561
        %v566 = vsel %vm564, %v559, %v563
        %v567 = vsel %vm564, %v561, %v557
        %v568 = vsel %vm564, %v563, %v559
        %s569 = scalar_lea.vmem [#allocation2], 96
        %v570 = vld [vmem:[%s569] sm:$0xff]
        %v571 = vld [vmem:[%s569 + $0x8] sm:$0xff]
        %v572 = vld [vmem:[%s569 + $0x10] sm:$0xff]
        %v573 = vld [vmem:[%s569 + $0x18] sm:$0xff]
        %v574 = vmul.f32 %v570, %v567
        %v575 = vmul.f32 %v571, %v565
        %v576 = vmul.f32 %v572, %v568
        %v577 = vmul.f32 %v573, %v566
        %v578 = vadd.f32 %v552, %v574
        %v579 = vadd.f32 %v553, %v575
        %v580 = vadd.f32 %v554, %v576
        %v581 = vadd.f32 %v555, %v577
        %s582 = scalar_lea.vmem [#allocation2], 128
        %v583 = vld [vmem:[%s582] sm:$0xff]
        %v584 = vld [vmem:[%s582 + $0x8] sm:$0xff]
        %v585 = vld [vmem:[%s582 + $0x10] sm:$0xff]
        %v586 = vld [vmem:[%s582 + $0x18] sm:$0xff]
        %v587 = vmul.f32 %v583, %v471
        %v588 = vmul.f32 %v584, %v472
        %v589 = vmul.f32 %v585, %v473
        %v590 = vmul.f32 %v586, %v474
        %v591 = vadd.f32 %v578, %v587
        %v592 = vadd.f32 %v579, %v588
        %v593 = vadd.f32 %v580, %v589
        %v594 = vadd.f32 %v581, %v590
        %595 = vrot.lane.b32.xlu0 %v471, 127
        %v596 = vpop.permute.xlu0 %595
        %597 = vrot.lane.b32.xlu0 %v473, 127
        %v598 = vpop.permute.xlu0 %597
        %599 = vrot.lane.b32.xlu0 %v472, 127
        %v600 = vpop.permute.xlu0 %599
        %601 = vrot.lane.b32.xlu0 %v474, 127
        %v602 = vpop.permute.xlu0 %601
        %vm603 = vcmp.lt.s32.totalorder %v486, 127
        %v604 = vsel %vm603, %v596, %v600
        %v605 = vsel %vm603, %v598, %v602
        %v606 = vsel %vm603, %v600, %v596
        %v607 = vsel %vm603, %v602, %v598
        %s608 = scalar_lea.vmem [#allocation2], 160
        %v609 = vld [vmem:[%s608] sm:$0xff]
        %v610 = vld [vmem:[%s608 + $0x8] sm:$0xff]
        %v611 = vld [vmem:[%s608 + $0x10] sm:$0xff]
        %v612 = vld [vmem:[%s608 + $0x18] sm:$0xff]
        %v613 = vmul.f32 %v609, %v604
        %v614 = vmul.f32 %v610, %v606
        %v615 = vmul.f32 %v611, %v605
        %v616 = vmul.f32 %v612, %v607
        %v617 = vadd.f32 %v591, %v613
        %v618 = vadd.f32 %v592, %v614
        %v619 = vadd.f32 %v593, %v615
        %v620 = vadd.f32 %v594, %v616
        %621 = vrot.lane.b32.xlu0 %v471, 113
        %v622 = vpop.permute.xlu0 %621
        %623 = vrot.lane.b32.xlu0 %v473, 113
        %v624 = vpop.permute.xlu0 %623
        %625 = vrot.lane.b32.xlu0 %v472, 113
        %v626 = vpop.permute.xlu0 %625
        %627 = vrot.lane.b32.xlu0 %v474, 113
        %v628 = vpop.permute.xlu0 %627
        %vm629 = vcmp.lt.s32.totalorder %v486, 113
        %v630 = vsel %vm629, %v622, %v626
        %v631 = vsel %vm629, %v624, %v628
        %v632 = vsel %vm629, %v626, %v622
        %v633 = vsel %vm629, %v628, %v624
        %s634 = scalar_lea.vmem [#allocation2], 192
        %v635 = vld [vmem:[%s634] sm:$0xff]
        %v636 = vld [vmem:[%s634 + $0x8] sm:$0xff]
        %v637 = vld [vmem:[%s634 + $0x10] sm:$0xff]
        %v638 = vld [vmem:[%s634 + $0x18] sm:$0xff]
        %v639 = vmul.f32 %v635, %v630
        %v640 = vmul.f32 %v636, %v632
        %v641 = vmul.f32 %v637, %v631
        %v642 = vmul.f32 %v638, %v633
        %v643 = vadd.f32 %v617, %v639
        %v644 = vadd.f32 %v618, %v640
        %v645 = vadd.f32 %v619, %v641
        %v646 = vadd.f32 %v620, %v642
        %647 = vrot.lane.b32.xlu0 %v471, 112
        %v648 = vpop.permute.xlu0 %647
        %649 = vrot.lane.b32.xlu0 %v473, 112
        %v650 = vpop.permute.xlu0 %649
        %651 = vrot.lane.b32.xlu0 %v472, 112
        %v652 = vpop.permute.xlu0 %651
        %653 = vrot.lane.b32.xlu0 %v474, 112
        %v654 = vpop.permute.xlu0 %653
        %vm655 = vcmp.lt.s32.totalorder %v486, 112
        %v656 = vsel %vm655, %v648, %v652
        %v657 = vsel %vm655, %v650, %v654
        %v658 = vsel %vm655, %v652, %v648
        %v659 = vsel %vm655, %v654, %v650
        %s660 = scalar_lea.vmem [#allocation2], 224
        %v661 = vld [vmem:[%s660] sm:$0xff]
        %v662 = vld [vmem:[%s660 + $0x8] sm:$0xff]
        %v663 = vld [vmem:[%s660 + $0x10] sm:$0xff]
        %v664 = vld [vmem:[%s660 + $0x18] sm:$0xff]
        %v665 = vmul.f32 %v661, %v656
        %v666 = vmul.f32 %v662, %v658
        %v667 = vmul.f32 %v663, %v657
        %v668 = vmul.f32 %v664, %v659
        %v669 = vadd.f32 %v643, %v665
        %v670 = vadd.f32 %v644, %v666
        %v671 = vadd.f32 %v645, %v667
        %v672 = vadd.f32 %v646, %v668
        %673 = vrot.lane.b32.xlu0 %v471, 111
        %v674 = vpop.permute.xlu0 %673
        %675 = vrot.lane.b32.xlu0 %v473, 111
        %v676 = vpop.permute.xlu0 %675
        %677 = vrot.lane.b32.xlu0 %v472, 111
        %v678 = vpop.permute.xlu0 %677
        %679 = vrot.lane.b32.xlu0 %v474, 111
        %v680 = vpop.permute.xlu0 %679
        %vm681 = vcmp.lt.s32.totalorder %v486, 111
        %v682 = vsel %vm681, %v674, %v678
        %v683 = vsel %vm681, %v676, %v680
        %v684 = vsel %vm681, %v678, %v674
        %v685 = vsel %vm681, %v680, %v676
        %s686 = scalar_lea.vmem [#allocation2], 256
        %v687 = vld [vmem:[%s686] sm:$0xff]
        %v688 = vld [vmem:[%s686 + $0x8] sm:$0xff]
        %v689 = vld [vmem:[%s686 + $0x10] sm:$0xff]
        %v690 = vld [vmem:[%s686 + $0x18] sm:$0xff]
        %v691 = vmul.f32 %v687, %v682
        %v692 = vmul.f32 %v688, %v684
        %v693 = vmul.f32 %v689, %v683
        %v694 = vmul.f32 %v690, %v685
        %v695 = vadd.f32 %v669, %v691
        %v696 = vadd.f32 %v670, %v692
        %v697 = vadd.f32 %v671, %v693
        %v698 = vadd.f32 %v672, %v694
        %700 = vset.pattern.permute.xlu0 1
        %701 = vperm.xlu0 %700, %v475
        %v702 = vpop.permute.xlu0 %701
        %705 = vset.pattern.permute.xlu0 1
        %706 = vperm.xlu0 %705, %v476
        %v707 = vpop.permute.xlu0 %706
        %v709 = vadd.f32 %v695, %v702
        %v710 = vadd.f32 %v696, %v702
        %v711 = vadd.f32 %v697, %v707
        %v712 = vadd.f32 %v698, %v707
        %v713 = vadd.f32 %v709, 3.0
        %v714 = vadd.f32 %v710, 3.0
        %v715 = vadd.f32 %v711, 3.0
        %v716 = vadd.f32 %v712, 3.0
        %v717 = vmax.f32 %v713, 0.0
        %v718 = vmax.f32 %v714, 0.0
        %v719 = vmax.f32 %v715, 0.0
        %v720 = vmax.f32 %v716, 0.0
        %v721 = vmin.f32 %v717, 6.0
        %v722 = vmin.f32 %v718, 6.0
        %v723 = vmin.f32 %v719, 6.0
        %v724 = vmin.f32 %v720, 6.0
        %v725 = vmul.f32 %v709, %v721
        %v726 = vmul.f32 %v710, %v722
        %v727 = vmul.f32 %v711, %v723
        %v728 = vmul.f32 %v712, %v724
        %v729 = vmul.f32 %v725, 0.16666667
        %v730 = vmul.f32 %v726, 0.16666667
        %v731 = vmul.f32 %v727, 0.16666667
        %v732 = vmul.f32 %v728, 0.16666667
        %v733 = vld [vmem:[%s4] sm:$0x3]
        %v735 = vperm.slane %v733, 0
        %v736 = vperm.slane %v733, 1
        %739 = vmatpush.xpose.msra.mxu0 0.0
        %740 = vmatpush.xpose.msra.mxu0 0.0
        %741 = vmatpush.xpose.msra.mxu0 0.0
        %742 = vmatpush.xpose.msra.mxu0 0.0
        %743 = vmatpush.xpose.msra.mxu0 0.0
        %744 = vmatpush.xpose.msra.mxu0 0.0
        %745 = vmatpush.xpose.msra.mxu0 0.0
        %746 = vmatpush.xpose.msra.mxu0 0.0
        %747 = vmatpush.xpose.msra.mxu0 0.0
        %748 = vmatpush.xpose.msra.mxu0 0.0
        %749 = vmatpush.xpose.msra.mxu0 0.0
        %750 = vmatpush.xpose.msra.mxu0 0.0
        %751 = vmatpush.xpose.msra.mxu0 0.0
        %752 = vmatpush.xpose.msra.mxu0 0.0
        %753 = vmatpush.xpose.msra.mxu0 %v731
        %754 = vmatpush.xpose.msra.mxu0 %v729
        %755 = vmatmul.f32.gmra.mxu0 %v735
        %v756 = vpop.f32.mrf.mxu0
        %v757 = vadd.f32 0.0, %v756
        %758 = vdwg.mxu0
        %759 = vmatpush.xpose.msra.mxu0 0.0
        %760 = vmatpush.xpose.msra.mxu0 0.0
        %761 = vmatpush.xpose.msra.mxu0 0.0
        %762 = vmatpush.xpose.msra.mxu0 0.0
        %763 = vmatpush.xpose.msra.mxu0 0.0
        %764 = vmatpush.xpose.msra.mxu0 0.0
        %765 = vmatpush.xpose.msra.mxu0 0.0
        %766 = vmatpush.xpose.msra.mxu0 0.0
        %767 = vmatpush.xpose.msra.mxu0 0.0
        %768 = vmatpush.xpose.msra.mxu0 0.0
        %769 = vmatpush.xpose.msra.mxu0 0.0
        %770 = vmatpush.xpose.msra.mxu0 0.0
        %771 = vmatpush.xpose.msra.mxu0 0.0
        %772 = vmatpush.xpose.msra.mxu0 0.0
        %773 = vmatpush.xpose.msra.mxu0 %v732
        %774 = vmatpush.xpose.msra.mxu0 %v730
        %775 = vmatmul.f32.gmra.mxu0 %v736
        %v776 = vpop.f32.mrf.mxu0
        %v777 = vadd.f32 %v757, %v776
        %778 = vdwg.mxu0
        %v779 = vld [vmem:[%s7] sm:$0x1]
        %v780 = vld [vmem:[%s5] sm:$0xff]
        %v781 = vld [vmem:[%s5 + $0x8] sm:$0xff]
        %vm782 = vcmask 130048
        %v784 = vsel %vm782, %v777, 0
        %786 = vmatpush.msra.mxu0 0.0
        %787 = vmatpush.msra.mxu0 0.0
        %788 = vmatpush.msra.mxu0 0.0
        %789 = vmatpush.msra.mxu0 0.0
        %790 = vmatpush.msra.mxu0 0.0
        %791 = vmatpush.msra.mxu0 0.0
        %792 = vmatpush.msra.mxu0 0.0
        %793 = vmatpush.msra.mxu0 0.0
        %794 = vmatpush.msra.mxu0 0.0
        %795 = vmatpush.msra.mxu0 0.0
        %796 = vmatpush.msra.mxu0 0.0
        %797 = vmatpush.msra.mxu0 0.0
        %798 = vmatpush.msra.mxu0 0.0
        %799 = vmatpush.msra.mxu0 0.0
        %800 = vmatpush.msra.mxu0 %v781
        %801 = vmatpush.msra.mxu0 %v780
        %802 = vmatmul.f32.gmra.mxu0 %v784
        %v803 = vpop.f32.mrf.mxu0
        %v804 = vadd.f32 %v779, %v803
        %805 = vdwg.mxu0
        %v806 = vmax.f32 %v804, 0.0
        %v807 = vld [vmem:[%s6] sm:$0xf]
        %v809 = vperm.slane %v779, 0
        %810 = vrot.lane.b32.xlu0 %v809, 124
        %v811 = vpop.permute.xlu0 %810
        %v814 = vsel %vm397, %v806, 0
        %v817 = vsel %vm404, %v807, 0
        %819 = vmatpush.msra.mxu0 0.0
        %820 = vmatpush.msra.mxu0 0.0
        %821 = vmatpush.msra.mxu0 0.0
        %822 = vmatpush.msra.mxu0 0.0
        %823 = vmatpush.msra.mxu0 0.0
        %824 = vmatpush.msra.mxu0 0.0
        %825 = vmatpush.msra.mxu0 0.0
        %826 = vmatpush.msra.mxu0 0.0
        %827 = vmatpush.msra.mxu0 0.0
        %828 = vmatpush.msra.mxu0 0.0
        %829 = vmatpush.msra.mxu0 0.0
        %830 = vmatpush.msra.mxu0 0.0
        %831 = vmatpush.msra.mxu0 0.0
        %832 = vmatpush.msra.mxu0 0.0
        %833 = vmatpush.msra.mxu0 0.0
        %834 = vmatpush.msra.mxu0 %v817
        %835 = vmatmul.f32.gmra.mxu0 %v814
        %v836 = vpop.f32.mrf.mxu0
        %v837 = vadd.f32 %v811, %v836
        %838 = vdwg.mxu0
        %v839 = vadd.f32 %v837, 3.0
        %v840 = vmax.f32 %v839, 0.0
        %v841 = vmin.f32 %v840, 6.0
        %v842 = vmul.f32 %v841, 0.16666667
        %v843 = vld [vmem:[%s8] sm:$0xf]
        %v844 = vld [vmem:[%s9] sm:$0xf]
        %v845 = vperm.slane %v842, 0
        %v846 = vmul.f32 %v843, %v845
        %848 = vset.pattern.permute.xlu0 0
        %849 = vperm.xlu0 %848, %v844
        %v850 = vpop.permute.xlu0 %849
        %v853 = vsel %vm782, %v846, 0
        %855 = vmatpush.msra.mxu0 0.0
        %856 = vmatpush.msra.mxu0 0.0
        %857 = vmatpush.msra.mxu0 0.0
        %858 = vmatpush.msra.mxu0 0.0
        %859 = vmatpush.msra.mxu0 0.0
        %860 = vmatpush.msra.mxu0 0.0
        %861 = vmatpush.msra.mxu0 0.0
        %862 = vmatpush.msra.mxu0 0.0
        %863 = vmatpush.msra.mxu0 0.0
        %864 = vmatpush.msra.mxu0 0.0
        %865 = vmatpush.msra.mxu0 0.0
        %866 = vmatpush.msra.mxu0 0.0
        %867 = vmatpush.msra.mxu0 0.0
        %868 = vmatpush.msra.mxu0 0.0
        %869 = vmatpush.msra.mxu0 %v731
        %870 = vmatpush.msra.mxu0 %v729
        %871 = vmatmul.f32.gmra.mxu0 %v853
        %v872 = vpop.f32.mrf.mxu0
        %v873 = vadd.f32 %v850, %v872
        %874 = vdwg.mxu0
        %875 = vmatpush.msra.mxu0 0.0
        %876 = vmatpush.msra.mxu0 0.0
        %877 = vmatpush.msra.mxu0 0.0
        %878 = vmatpush.msra.mxu0 0.0
        %879 = vmatpush.msra.mxu0 0.0
        %880 = vmatpush.msra.mxu0 0.0
        %881 = vmatpush.msra.mxu0 0.0
        %882 = vmatpush.msra.mxu0 0.0
        %883 = vmatpush.msra.mxu0 0.0
        %884 = vmatpush.msra.mxu0 0.0
        %885 = vmatpush.msra.mxu0 0.0
        %886 = vmatpush.msra.mxu0 0.0
        %887 = vmatpush.msra.mxu0 0.0
        %888 = vmatpush.msra.mxu0 0.0
        %889 = vmatpush.msra.mxu0 %v732
        %890 = vmatpush.msra.mxu0 %v730
        %891 = vmatmul.f32.gmra.mxu0 %v853
        %v892 = vpop.f32.mrf.mxu0
        %v893 = vadd.f32 %v850, %v892
        %894 = vdwg.mxu0
        %895 = vst [vmem:[#allocation1] ss:$2 sm:$0xff] %v378
        %v896 = vld.sshfl [vmem:[#allocation1] sm:$0xff pattern:$0x75316420]
        %v897 = vld.sshfl [vmem:[#allocation1 + $0x8] sm:$0xff pattern:$0x75316420]
        %v900 = vadd.f32 %v873, %v896
        %v901 = vadd.f32 %v893, %v897
        %v904 = vrot.slane %v901, 4
        %v905 = vsel %vm404, %v900, %v904
        %907 = vst [vmem:[%s370] sm:$0xff] %v905
        %s908 = sand.u32 %s248, 1
        %s909 = scalar_lea.sflag [#allocation4], %s908
        %s910 = sand.u32 %s248, 1
        %s911 = smul.addr %s910, 8
        %s912 = scalar_lea.vmem [#allocation5], %s911
        // Predicated region
        $region65: #{tpu_custom_call.1} parent=59 // pred_check
          %p913 = pneg %p258
        $region66: #{tpu_custom_call.1} parent=59 // pred_check_branch
          %915 = sbr.rel (%p913) target = $region68
        $region67: #{tpu_custom_call.1} parent=59 // pred_region
          %s916 = smul.u32 2, %s25
          %918 = vsyncadd %s909, 0
          %s919 = smul.addr %s916, 4
          %s920 = scalar_lea.hbm %s10, %s919
          %s922 = sshll.u32 %s912, 4
          %s923 = int_to_ptr.vmem [resolvable:$true] %s922
          %s924 = sshll.u32 %s920, 4
          %s925 = int_to_ptr.hbm [resolvable:$true] %s924
          %927 = dma.vmem_to_hbm [thread:$0]  %s923, 128, %s925, %s909
        $region68: #{tpu_custom_call.1} parent=59 // pred_fallthru
          _
      $region60: #{tpu_custom_call.1} parent=5 // pred_fallthru
        _
      %p928 = scmp.le.s32.totalorder 2, %s20
      // Predicated region
      $region69: #{tpu_custom_call.1} parent=5 // pred_check
        %p929 = pneg %p928
      $region70: #{tpu_custom_call.1} parent=5 // pred_check_branch
        %931 = sbr.rel (%p929) target = $region72
      $region71: #{tpu_custom_call.1} parent=5 // pred_region
        %s932 = ssub.s32 %s20, 2
        // Predicated region
        $region73: #{tpu_custom_call.1} parent=71 // pred_check
          %p933 = pneg %p264
        $region74: #{tpu_custom_call.1} parent=71 // pred_check_branch
          %935 = sbr.rel (%p933) target = $region76
        $region75: #{tpu_custom_call.1} parent=71 // pred_region
          %s936 = sand.u32 %s249, 1
          %s937 = scalar_lea.sflag [#allocation4], %s936
          %s938 = sand.u32 %s249, 1
          %s939 = smul.addr %s938, 8
          %s940 = scalar_lea.vmem [#allocation5], %s939
          %942 = dma.done %s937, 128
        $region76: #{tpu_custom_call.1} parent=71 // pred_fallthru
          _
      $region72: #{tpu_custom_call.1} parent=5 // pred_fallthru
        _
    $region6: #{tpu_custom_call.1} parent=1 // loop_footer
      %s24 = sadd.s32 1, %s20
    $region7: #{tpu_custom_call.1} parent=1 // loop_footer_branch
      %19 = sbr.rel target = $region3
    $region8: #{tpu_custom_call.1} parent=1 // loop_exit
      _
    %943 = vsyncpa [#allocation3], 1
    %s944 = scalar_lea.sflag [#allocation3], 1
    %945 = vsyncpa %s944, 1
    %946 = vsyncpa [#allocation4], 1
    %s947 = scalar_lea.sflag [#allocation4], 1
    %948 = vsyncpa %s947, 1

</llo_original>
